<compile_context>
chip_gen: v7x
topology: tpu7x:2x2x1
jax: 0.10.0
libtpu: 0.0.40
codegen_flags: <defaults>
</compile_context>

<pallas_src>
import jax
import jax.numpy as jnp
from jax.experimental import pallas as pl
from jax.experimental.pallas import tpu as pltpu

IN_F = 256        # input features
H1 = 120          # first hidden width (logical)
H2 = 84           # second hidden width (logical)
OUT_F = 10        # classes
PADW = 128        # lane-padded hidden width
TILE_B_CAP = 4096                 # rows per batch tile (amortize per-step overhead)
VMEM_LIMIT_BYTES = 48 * 1024 * 1024


def _round_up(x, m):
    return ((x + m - 1) // m) * m


def _classifier_kernel(x_ref, w1_ref, b1_ref, w2_ref, b2_ref, w3_ref, b3_ref,
                       out_ref):
    # x streamed in its native dtype; cast to bf16 in-kernel (hidden under DMA).
    x = x_ref[...].astype(jnp.bfloat16)                          # (TB, 256)

    # Linear(256 -> 128 padded) + bias + ReLU. bf16 MXU, f32 accumulation;
    # intermediate materialized in bf16 (halves vst/vld traffic + VMEM).
    h1 = jnp.dot(x, w1_ref[...], preferred_element_type=jnp.float32)
    h1 = jnp.maximum(h1 + b1_ref[...], 0.0).astype(jnp.bfloat16)  # (TB, 128)

    # Linear(128 -> 128 padded) + bias + ReLU.
    h2 = jnp.dot(h1, w2_ref[...], preferred_element_type=jnp.float32)
    h2 = jnp.maximum(h2 + b2_ref[...], 0.0).astype(jnp.bfloat16)  # (TB, 128)

    # Linear(128 -> 10) + bias.
    logits = jnp.dot(h2, w3_ref[...],
                     preferred_element_type=jnp.float32) + b3_ref[...]

    # softmax over the class dim (F.softmax on a 2-D tensor -> dim=1).
    # Kept in f32 with an exact divide: EUP/VPU have huge slack under the DMA.
    # TODO(synk): on v6e/v7x, profile whether a bf16 exp epilogue is worth it
    # once the tile-size change shifts the binding unit away from HBM.
    m = jnp.max(logits, axis=-1, keepdims=True)
    e = jnp.exp(logits - m)
    denom = jnp.sum(e, axis=-1, keepdims=True)
    out_ref[...] = e / denom


def classifier_forward(x, prepared_params, tile_b_cap=TILE_B_CAP):
    """x: (B, 256) float (any dtype; cast to bf16 in-kernel) -> (B, 10) f32 probs."""
    w1, b1, w2, b2, w3, b3 = prepared_params
    B = x.shape[0]
    assert x.shape[1] == IN_F

    # Batch tile: multiple of 16 (bf16 sublane packing), capped for VMEM.
    if B >= 16:
        tb = min(tile_b_cap, _round_up(B, 16))
        # Keep >= 2 grid steps so v7x's two TensorCores both get work along the
        # "parallel" batch axis; costs ~0.35 us extra on single-TC chips.
        if B >= 32:
            tb = min(tb, _round_up(pl.cdiv(B, 2), 16))
    else:
        tb = _round_up(max(B, 1), 8)
    num_tiles = pl.cdiv(B, tb)
    # No jnp.pad of x: Pallas masks the partial final tile's writes, and the
    # per-row computation is independent, so undefined rows in the padded tail
    # never contaminate valid outputs.

    def _const2d(shape):
        # Full-extent block whose block index never changes across the grid:
        # stays VMEM-resident, no per-step re-DMA.
        return pl.BlockSpec(shape, lambda i: (0, 0))

    weight_bytes = sum(int(a.size) * a.dtype.itemsize
                       for a in (w1, b1, w2, b2, w3, b3))
    cost = pl.CostEstimate(
        flops=2 * B * (IN_F * PADW + PADW * PADW + PADW * OUT_F),
        transcendentals=B * OUT_F,
        bytes_accessed=int(x.size) * x.dtype.itemsize + B * OUT_F * 4 + weight_bytes,
    )

    return pl.pallas_call(
        _classifier_kernel,
        out_shape=jax.ShapeDtypeStruct((B, OUT_F), jnp.float32),
        grid=(num_tiles,),
        in_specs=[
            pl.BlockSpec((tb, IN_F), lambda i: (i, 0)),   # x: batch-tiled
            _const2d(w1.shape), _const2d(b1.shape),
            _const2d(w2.shape), _const2d(b2.shape),
            _const2d(w3.shape), _const2d(b3.shape),
        ],
        out_specs=pl.BlockSpec((tb, OUT_F), lambda i: (i, 0)),
        compiler_params=pltpu.CompilerParams(
            dimension_semantics=("parallel",),
            vmem_limit_bytes=VMEM_LIMIT_BYTES),
        cost_estimate=cost,
    )(x, w1, b1, w2, b2, w3, b3)


def init_params(key):
    """torch.nn.Linear-style init U[-1/sqrt(fan_in), 1/sqrt(fan_in)].

    Returns raw f32 params with shapes (in, out) / (1, out)."""
    sizes = [(IN_F, H1), (H1, H2), (H2, OUT_F)]
    params = []
    for i, (fan_in, fan_out) in enumerate(sizes):
        kw, kb = jax.random.split(jax.random.fold_in(key, i))
        bound = 1.0 / jnp.sqrt(jnp.float32(fan_in))
        w = jax.random.uniform(kw, (fan_in, fan_out), jnp.float32,
                               minval=-bound, maxval=bound)
        b = jax.random.uniform(kb, (1, fan_out), jnp.float32,
                               minval=-bound, maxval=bound)
        params += [w, b]
    return tuple(params)


def prepare_params(params):
    """Zero-pad hidden widths to 128 lanes; weights -> bf16, biases stay f32.

    ReLU(0) = 0, so padded columns never affect the real outputs."""
    w1, b1, w2, b2, w3, b3 = params

    def pad_w(w, rows, cols):
        out = jnp.zeros((rows, cols), jnp.bfloat16)
        return out.at[:w.shape[0], :w.shape[1]].set(w.astype(jnp.bfloat16))

    def pad_b(b, cols):
        out = jnp.zeros((1, cols), jnp.float32)
        return out.at[:, :b.shape[1]].set(b.astype(jnp.float32))

    return (pad_w(w1, IN_F, PADW), pad_b(b1, PADW),
            pad_w(w2, PADW, PADW), pad_b(b2, PADW),
            pad_w(w3, PADW, OUT_F), pad_b(b3, OUT_F))


def _reference_forward_quant(x, prepared_params):
    """Reference with the same bf16 quantization as the kernel (tight check)."""
    w1, b1, w2, b2, w3, b3 = prepared_params
    xb = x.astype(jnp.bfloat16)
    h1 = jnp.maximum(
        jnp.dot(xb, w1, preferred_element_type=jnp.float32) + b1,
        0.0).astype(jnp.bfloat16)
    h2 = jnp.maximum(
        jnp.dot(h1, w2, preferred_element_type=jnp.float32) + b2,
        0.0).astype(jnp.bfloat16)
    logits = jnp.dot(h2, w3, preferred_element_type=jnp.float32) + b3
    return jax.nn.softmax(logits, axis=-1)


def _reference_forward_f32(x, raw_params):
    """Full-precision reference with the original unpadded f32 params (sanity)."""
    w1, b1, w2, b2, w3, b3 = raw_params
    h1 = jnp.maximum(x @ w1 + b1, 0.0)
    h2 = jnp.maximum(h1 @ w2 + b2, 0.0)
    logits = h2 @ w3 + b3
    return jax.nn.softmax(logits, axis=-1)


if __name__ == "__main__":
    key = jax.random.PRNGKey(0)
    k_x, k_p = jax.random.split(key)

    # B=40 deliberately exercises both grid steps AND a partial (masked) tail
    # tile without any wrapper-side padding.
    B = 40
    x = jax.random.normal(k_x, (B, IN_F), dtype=jnp.float32)  # native f32 input

    raw_params = init_params(k_p)
    prepared = prepare_params(raw_params)

    out = jax.block_until_ready(classifier_forward(x, prepared))

    ref_q = _reference_forward_quant(x, prepared)
    ref_f32 = _reference_forward_f32(x, raw_params)

    assert out.shape == (B, OUT_F)
    # Tight check vs a reference with identical bf16 quantization
    # (residual error: MXU accumulation order only).
    assert jnp.allclose(out, ref_q, atol=1e-2), "mismatch vs bf16-matched reference"
    # Looser sanity check vs the pure-f32 reference (bf16 streaming is an
    # explicit accuracy decision).
    assert jnp.allclose(out, ref_f32, atol=5e-2), "mismatch vs f32 reference"
    # Rows sum to 1 (exact divide in the epilogue).
    assert jnp.allclose(jnp.sum(out, axis=-1), 1.0, atol=1e-3)

    print("KERNEL_OK")
</pallas_src>

<mosaic_0001>
module attributes {stable_mosaic.version = 11 : i64} {
  func.func @_classifier_kernel(%arg0: i32, %arg1: memref<32x256xf32, #tpu.memory_space<vmem>>, %arg2: memref<256x128xbf16, #tpu.memory_space<vmem>>, %arg3: memref<1x128xf32, #tpu.memory_space<vmem>>, %arg4: memref<128x128xbf16, #tpu.memory_space<vmem>>, %arg5: memref<1x128xf32, #tpu.memory_space<vmem>>, %arg6: memref<128x10xbf16, #tpu.memory_space<vmem>>, %arg7: memref<1x10xf32, #tpu.memory_space<vmem>>, %arg8: memref<32x10xf32, #tpu.memory_space<vmem>>) attributes {dimension_semantics = [#tpu.dimension_semantics<parallel>], iteration_bounds = array<i64: 2>, scalar_prefetch = 0 : i64, scratch_operands = 0 : i64, tpu.core_type = #tpu.core_type<tc>, window_params = [{transform_indices = @transform_0, window_bounds = array<i64: 32, 256>}, {pipeline_mode = #tpu.pipeline_mode<synchronous>, transform_indices = @transform_1, window_bounds = array<i64: 256, 128>}, {pipeline_mode = #tpu.pipeline_mode<synchronous>, transform_indices = @transform_2, window_bounds = array<i64: 1, 128>}, {pipeline_mode = #tpu.pipeline_mode<synchronous>, transform_indices = @transform_3, window_bounds = array<i64: 128, 128>}, {pipeline_mode = #tpu.pipeline_mode<synchronous>, transform_indices = @transform_4, window_bounds = array<i64: 1, 128>}, {pipeline_mode = #tpu.pipeline_mode<synchronous>, transform_indices = @transform_5, window_bounds = array<i64: 128, 10>}, {pipeline_mode = #tpu.pipeline_mode<synchronous>, transform_indices = @transform_6, window_bounds = array<i64: 1, 10>}, {transform_indices = @transform_7, window_bounds = array<i64: 32, 10>}]} {
    %c0 = arith.constant 0 : index
    %c0_0 = arith.constant 0 : index
    %0 = vector.load %arg1[%c0, %c0_0] : memref<32x256xf32, #tpu.memory_space<vmem>>, vector<32x256xf32>
    %1 = arith.truncf %0 : vector<32x256xf32> to vector<32x256xbf16>
    %c0_1 = arith.constant 0 : index
    %c0_2 = arith.constant 0 : index
    %2 = vector.load %arg2[%c0_1, %c0_2] : memref<256x128xbf16, #tpu.memory_space<vmem>>, vector<256x128xbf16>
    %cst = arith.constant dense<0.000000e+00> : vector<32x128xf32>
    %3 = tpu.matmul %1, %2, %cst {dimension_numbers = #tpu.dot_dimension_numbers<[1], [0], [0], [1], [0, 0, 1, 1], [], []>} : vector<32x256xbf16>, vector<256x128xbf16>, vector<32x128xf32> -> vector<32x128xf32>
    %c0_3 = arith.constant 0 : index
    %c0_4 = arith.constant 0 : index
    %4 = vector.load %arg3[%c0_3, %c0_4] : memref<1x128xf32, #tpu.memory_space<vmem>>, vector<1x128xf32>
    %5 = vector.broadcast %4 : vector<1x128xf32> to vector<32x128xf32>
    %6 = arith.addf %3, %5 : vector<32x128xf32>
    %cst_5 = arith.constant 0.000000e+00 : f32
    %7 = vector.broadcast %cst_5 : f32 to vector<32x128xf32>
    %8 = arith.maximumf %6, %7 : vector<32x128xf32>
    %9 = arith.truncf %8 : vector<32x128xf32> to vector<32x128xbf16>
    %c0_6 = arith.constant 0 : index
    %c0_7 = arith.constant 0 : index
    %10 = vector.load %arg4[%c0_6, %c0_7] : memref<128x128xbf16, #tpu.memory_space<vmem>>, vector<128x128xbf16>
    %cst_8 = arith.constant dense<0.000000e+00> : vector<32x128xf32>
    %11 = tpu.matmul %9, %10, %cst_8 {dimension_numbers = #tpu.dot_dimension_numbers<[1], [0], [0], [1], [0, 0, 1, 1], [], []>} : vector<32x128xbf16>, vector<128x128xbf16>, vector<32x128xf32> -> vector<32x128xf32>
    %c0_9 = arith.constant 0 : index
    %c0_10 = arith.constant 0 : index
    %12 = vector.load %arg5[%c0_9, %c0_10] : memref<1x128xf32, #tpu.memory_space<vmem>>, vector<1x128xf32>
    %13 = vector.broadcast %12 : vector<1x128xf32> to vector<32x128xf32>
    %14 = arith.addf %11, %13 : vector<32x128xf32>
    %cst_11 = arith.constant 0.000000e+00 : f32
    %15 = vector.broadcast %cst_11 : f32 to vector<32x128xf32>
    %16 = arith.maximumf %14, %15 : vector<32x128xf32>
    %17 = arith.truncf %16 : vector<32x128xf32> to vector<32x128xbf16>
    %c0_12 = arith.constant 0 : index
    %c0_13 = arith.constant 0 : index
    %18 = vector.load %arg6[%c0_12, %c0_13] : memref<128x10xbf16, #tpu.memory_space<vmem>>, vector<128x10xbf16>
    %cst_14 = arith.constant dense<0.000000e+00> : vector<32x10xf32>
    %19 = tpu.matmul %17, %18, %cst_14 {dimension_numbers = #tpu.dot_dimension_numbers<[1], [0], [0], [1], [0, 0, 1, 1], [], []>} : vector<32x128xbf16>, vector<128x10xbf16>, vector<32x10xf32> -> vector<32x10xf32>
    %c0_15 = arith.constant 0 : index
    %c0_16 = arith.constant 0 : index
    %20 = vector.load %arg7[%c0_15, %c0_16] : memref<1x10xf32, #tpu.memory_space<vmem>>, vector<1x10xf32>
    %21 = vector.broadcast %20 : vector<1x10xf32> to vector<32x10xf32>
    %22 = arith.addf %19, %21 : vector<32x10xf32>
    %cst_17 = arith.constant dense<0xFF800000> : vector<32xf32>
    %23 = vector.multi_reduction <maximumf>, %22, %cst_17 [1] : vector<32x10xf32> to vector<32xf32>
    %24 = vector.shape_cast %23 : vector<32xf32> to vector<32x1xf32>
    %25 = vector.broadcast %24 : vector<32x1xf32> to vector<32x10xf32>
    %26 = arith.subf %22, %25 : vector<32x10xf32>
    %27 = math.exp %26 : vector<32x10xf32>
    %cst_18 = arith.constant dense<0.000000e+00> : vector<32xf32>
    %28 = vector.multi_reduction <add>, %27, %cst_18 [1] : vector<32x10xf32> to vector<32xf32>
    %29 = vector.shape_cast %28 : vector<32xf32> to vector<32x1xf32>
    %30 = vector.broadcast %29 : vector<32x1xf32> to vector<32x10xf32>
    %31 = arith.divf %27, %30 : vector<32x10xf32>
    %c0_19 = arith.constant 0 : index
    %c0_20 = arith.constant 0 : index
    %32 = vector.load %arg8[%c0_19, %c0_20] : memref<32x10xf32, #tpu.memory_space<vmem>>, vector<32x10xf32>
    tpu.vector_store %arg8[%c0_19, %c0_20], %31 {strides = array<i32>} : memref<32x10xf32, #tpu.memory_space<vmem>>, vector<32x10xf32>,
    return
  }
  func.func @transform_0(%arg0: i32) -> (i32, i32) {
    %c0_i32 = arith.constant 0 : i32
    %c0_i32_0 = arith.constant 0 : i32
    return %arg0, %c0_i32 : i32, i32
  }
  func.func @transform_1(%arg0: i32) -> (i32, i32) {
    %c0_i32 = arith.constant 0 : i32
    %c0_i32_0 = arith.constant 0 : i32
    %c0_i32_1 = arith.constant 0 : i32
    return %c0_i32, %c0_i32_0 : i32, i32
  }
  func.func @transform_2(%arg0: i32) -> (i32, i32) {
    %c0_i32 = arith.constant 0 : i32
    %c0_i32_0 = arith.constant 0 : i32
    %c0_i32_1 = arith.constant 0 : i32
    return %c0_i32, %c0_i32_0 : i32, i32
  }
  func.func @transform_3(%arg0: i32) -> (i32, i32) {
    %c0_i32 = arith.constant 0 : i32
    %c0_i32_0 = arith.constant 0 : i32
    %c0_i32_1 = arith.constant 0 : i32
    return %c0_i32, %c0_i32_0 : i32, i32
  }
  func.func @transform_4(%arg0: i32) -> (i32, i32) {
    %c0_i32 = arith.constant 0 : i32
    %c0_i32_0 = arith.constant 0 : i32
    %c0_i32_1 = arith.constant 0 : i32
    return %c0_i32, %c0_i32_0 : i32, i32
  }
  func.func @transform_5(%arg0: i32) -> (i32, i32) {
    %c0_i32 = arith.constant 0 : i32
    %c0_i32_0 = arith.constant 0 : i32
    %c0_i32_1 = arith.constant 0 : i32
    return %c0_i32, %c0_i32_0 : i32, i32
  }
  func.func @transform_6(%arg0: i32) -> (i32, i32) {
    %c0_i32 = arith.constant 0 : i32
    %c0_i32_0 = arith.constant 0 : i32
    %c0_i32_1 = arith.constant 0 : i32
    return %c0_i32, %c0_i32_0 : i32, i32
  }
  func.func @transform_7(%arg0: i32) -> (i32, i32) {
    %c0_i32 = arith.constant 0 : i32
    %c0_i32_0 = arith.constant 0 : i32
    return %arg0, %c0_i32 : i32, i32
  }
}

</mosaic_0001>

<llo_original>
// kernel: tpu_custom_call.1
$region0: #{tpu_custom_call.1}
  #allocation0 [shape = 'u32[]', space=smem, size = 0x4, offset = 0x4, fixed_abs, tag = 'smem constant byte address 0x4 - core index']
  #allocation1 [shape = 'u32[144,128]{1,0:T(1,128)}', space=vmem, size = 0x12000, scoped, tag = 'internal scratch']
  %s0 = inlined_call_operand.hbm [shape: f32[40,256], index: 0, kind: input, shape index: {}]
  %s1 = inlined_call_operand.hbm [shape: bf16[256,128], index: 1, kind: input, shape index: {}]
  %s2 = inlined_call_operand.vmem [shape: f32[1,128], index: 2, kind: input, shape index: {}]
  %s3 = inlined_call_operand.vmem [shape: bf16[128,128], index: 3, kind: input, shape index: {}]
  %s4 = inlined_call_operand.vmem [shape: f32[1,128], index: 4, kind: input, shape index: {}]
  %s5 = inlined_call_operand.vmem [shape: bf16[128,10], index: 5, kind: input, shape index: {}]
  %s6 = inlined_call_operand.vmem [shape: f32[1,10], index: 6, kind: input, shape index: {}]
  %s7 = inlined_call_operand.vmem [shape: f32[40,10], index: 7, kind: output, shape index: {}]
  %s8 = sld [smem:[#allocation0]]
  $region117: #{tpu_custom_call.1} parent=0
    _
  %s10 = ssub.s32 1, %s8
  %s11 = scalar_select 0, %s10, %s8
  $region1: #{tpu_custom_call.1} parent=0
    #allocation2 [shape = 'u8[65536]{0}', space=vmem, size = 0x10000, scoped, tag = 'input window, operand 0']
    #allocation3 [shape = 's32[2]{0}', space=sflag, size = 0x8, scoped, tag = 'scoped memory for tpu_custom_call.1']
    #allocation4 [shape = 'u8[65536]{0}', space=vmem, size = 0x10000, scoped, tag = 'input window, operand 1, single buffered']
    #allocation5 [shape = 's32[1]{0}', space=sflag, size = 0x4, scoped, tag = 'scoped memory for tpu_custom_call.1']
    #allocation6 [shape = 'u8[32768]{0}', space=vmem, size = 0x8000, scoped, tag = 'output window, operand 0']
    %12 = vsyncpa [#allocation3], 0
    %s13 = scalar_lea.sflag [#allocation3], 1
    %14 = vsyncpa %s13, 0
    %15 = vsyncpa [#allocation5], 0
    loop: start=0, step=1, limit=4
    $region2: #{tpu_custom_call.1} parent=1 // loop_pre_header
      _
    $region3: #{tpu_custom_call.1} parent=1 // loop_header
      %s17 = sphi 0, %s21
      %p18 = scmp.ge.s32.totalorder %s17, 4
      %s27 = sphi 0, %s29
      %s30 = sphi 0, %s27
      %s31 = sphi 0, %s30
      %s47 = sphi 0, %s31
      %s51 = sphi 0, %s51
      %s53 = sphi 0, %s51
      %s54 = sphi 0, %s53
      %s68 = sphi 0, %s54
      %s72 = sphi 0, %s72
      %s74 = sphi 0, %s72
      %s75 = sphi 0, %s74
      %s89 = sphi 0, %s75
      %s93 = sphi 0, %s93
      %s95 = sphi 0, %s93
      %s96 = sphi 0, %s95
      %s110 = sphi 0, %s96
      %s114 = sphi 0, %s114
      %s116 = sphi 0, %s114
      %s117 = sphi 0, %s116
      %s131 = sphi 0, %s117
      %s135 = sphi 0, %s135
      %s137 = sphi 0, %s135
      %s138 = sphi 0, %s137
      %s152 = sphi 0, %s138
      %s156 = sphi 0, %s156
      %s158 = sphi 0, %s156
      %s159 = sphi 0, %s158
      %s173 = sphi 0, %s159
      %s179 = sphi 0, %s181
      %s182 = sphi 0, %s179
      %s183 = sphi 0, %s182
      %s199 = sphi 0, %s183
    $region4: #{tpu_custom_call.1} parent=1 // loop_header_branch
      %20 = sbr.rel (%p18) target = $region8
    $region5: #{tpu_custom_call.1} parent=1 // loop_body
      %s22 = ssub.s32 %s17, 1
      %s23 = ssub.s32 %s17, 2
      %s24 = sadd.s32 %s17, 1
      %s25 = ssub.s32 %s17, %s24
      %p26 = scmp.eq.s32.totalorder %s25, 0
      %s28 = sadd.s32 %s27, 1
      %s29 = scalar_select %p26, %s27, %s28
      %p32 = pneg %p26
      %p33 = scmp.eq.s32.totalorder %s17, 1
      %p34 = por %p32, %p33
      %p35 = scmp.ne.s32.totalorder %s27, %s30
      %p36 = scmp.eq.s32.totalorder %s17, 0
      %p37 = por %p35, %p36
      %p38 = scmp.ne.s32.totalorder %s27, %s30
      %p39 = scmp.eq.s32.totalorder %s22, 1
      %p40 = por %p38, %p39
      %p41 = scmp.ne.s32.totalorder %s30, %s31
      %p42 = scmp.eq.s32.totalorder %s22, 0
      %p43 = por %p41, %p42
      %p44 = scmp.ne.s32.totalorder %s30, %s31
      %p45 = scmp.eq.s32.totalorder %s23, 1
      %p46 = por %p44, %p45
      %p48 = scmp.ne.s32.totalorder %s31, %s47
      %p49 = scmp.eq.s32.totalorder %s23, 0
      %p50 = por %p48, %p49
      %s52 = sadd.s32 %s51, 1
      %p55 = scmp.eq.s32.totalorder %s17, 1
      %p56 = scmp.ne.s32.totalorder %s51, %s53
      %p57 = scmp.eq.s32.totalorder %s17, 0
      %p58 = por %p56, %p57
      %p59 = scmp.ne.s32.totalorder %s51, %s53
      %p60 = scmp.eq.s32.totalorder %s22, 1
      %p61 = por %p59, %p60
      %p62 = scmp.ne.s32.totalorder %s53, %s54
      %p63 = scmp.eq.s32.totalorder %s22, 0
      %p64 = por %p62, %p63
      %p65 = scmp.ne.s32.totalorder %s53, %s54
      %p66 = scmp.eq.s32.totalorder %s23, 1
      %p67 = por %p65, %p66
      %p69 = scmp.ne.s32.totalorder %s54, %s68
      %p70 = scmp.eq.s32.totalorder %s23, 0
      %p71 = por %p69, %p70
      %s73 = sadd.s32 %s72, 1
      %p76 = scmp.eq.s32.totalorder %s17, 1
      %p77 = scmp.ne.s32.totalorder %s72, %s74
      %p78 = scmp.eq.s32.totalorder %s17, 0
      %p79 = por %p77, %p78
      %p80 = scmp.ne.s32.totalorder %s72, %s74
      %p81 = scmp.eq.s32.totalorder %s22, 1
      %p82 = por %p80, %p81
      %p83 = scmp.ne.s32.totalorder %s74, %s75
      %p84 = scmp.eq.s32.totalorder %s22, 0
      %p85 = por %p83, %p84
      %p86 = scmp.ne.s32.totalorder %s74, %s75
      %p87 = scmp.eq.s32.totalorder %s23, 1
      %p88 = por %p86, %p87
      %p90 = scmp.ne.s32.totalorder %s75, %s89
      %p91 = scmp.eq.s32.totalorder %s23, 0
      %p92 = por %p90, %p91
      %s94 = sadd.s32 %s93, 1
      %p97 = scmp.eq.s32.totalorder %s17, 1
      %p98 = scmp.ne.s32.totalorder %s93, %s95
      %p99 = scmp.eq.s32.totalorder %s17, 0
      %p100 = por %p98, %p99
      %p101 = scmp.ne.s32.totalorder %s93, %s95
      %p102 = scmp.eq.s32.totalorder %s22, 1
      %p103 = por %p101, %p102
      %p104 = scmp.ne.s32.totalorder %s95, %s96
      %p105 = scmp.eq.s32.totalorder %s22, 0
      %p106 = por %p104, %p105
      %p107 = scmp.ne.s32.totalorder %s95, %s96
      %p108 = scmp.eq.s32.totalorder %s23, 1
      %p109 = por %p107, %p108
      %p111 = scmp.ne.s32.totalorder %s96, %s110
      %p112 = scmp.eq.s32.totalorder %s23, 0
      %p113 = por %p111, %p112
      %s115 = sadd.s32 %s114, 1
      %p118 = scmp.eq.s32.totalorder %s17, 1
      %p119 = scmp.ne.s32.totalorder %s114, %s116
      %p120 = scmp.eq.s32.totalorder %s17, 0
      %p121 = por %p119, %p120
      %p122 = scmp.ne.s32.totalorder %s114, %s116
      %p123 = scmp.eq.s32.totalorder %s22, 1
      %p124 = por %p122, %p123
      %p125 = scmp.ne.s32.totalorder %s116, %s117
      %p126 = scmp.eq.s32.totalorder %s22, 0
      %p127 = por %p125, %p126
      %p128 = scmp.ne.s32.totalorder %s116, %s117
      %p129 = scmp.eq.s32.totalorder %s23, 1
      %p130 = por %p128, %p129
      %p132 = scmp.ne.s32.totalorder %s117, %s131
      %p133 = scmp.eq.s32.totalorder %s23, 0
      %p134 = por %p132, %p133
      %s136 = sadd.s32 %s135, 1
      %p139 = scmp.eq.s32.totalorder %s17, 1
      %p140 = scmp.ne.s32.totalorder %s135, %s137
      %p141 = scmp.eq.s32.totalorder %s17, 0
      %p142 = por %p140, %p141
      %p143 = scmp.ne.s32.totalorder %s135, %s137
      %p144 = scmp.eq.s32.totalorder %s22, 1
      %p145 = por %p143, %p144
      %p146 = scmp.ne.s32.totalorder %s137, %s138
      %p147 = scmp.eq.s32.totalorder %s22, 0
      %p148 = por %p146, %p147
      %p149 = scmp.ne.s32.totalorder %s137, %s138
      %p150 = scmp.eq.s32.totalorder %s23, 1
      %p151 = por %p149, %p150
      %p153 = scmp.ne.s32.totalorder %s138, %s152
      %p154 = scmp.eq.s32.totalorder %s23, 0
      %p155 = por %p153, %p154
      %s157 = sadd.s32 %s156, 1
      %p160 = scmp.eq.s32.totalorder %s17, 1
      %p161 = scmp.ne.s32.totalorder %s156, %s158
      %p162 = scmp.eq.s32.totalorder %s17, 0
      %p163 = por %p161, %p162
      %p164 = scmp.ne.s32.totalorder %s156, %s158
      %p165 = scmp.eq.s32.totalorder %s22, 1
      %p166 = por %p164, %p165
      %p167 = scmp.ne.s32.totalorder %s158, %s159
      %p168 = scmp.eq.s32.totalorder %s22, 0
      %p169 = por %p167, %p168
      %p170 = scmp.ne.s32.totalorder %s158, %s159
      %p171 = scmp.eq.s32.totalorder %s23, 1
      %p172 = por %p170, %p171
      %p174 = scmp.ne.s32.totalorder %s159, %s173
      %p175 = scmp.eq.s32.totalorder %s23, 0
      %p176 = por %p174, %p175
      %s177 = ssub.s32 %s17, %s24
      %p178 = scmp.eq.s32.totalorder %s177, 0
      %s180 = sadd.s32 %s179, 1
      %s181 = scalar_select %p178, %s179, %s180
      %p184 = pneg %p178
      %p185 = scmp.eq.s32.totalorder %s17, 1
      %p186 = por %p184, %p185
      %p187 = scmp.ne.s32.totalorder %s179, %s182
      %p188 = scmp.eq.s32.totalorder %s17, 0
      %p189 = por %p187, %p188
      %p190 = scmp.ne.s32.totalorder %s179, %s182
      %p191 = scmp.eq.s32.totalorder %s22, 1
      %p192 = por %p190, %p191
      %p193 = scmp.ne.s32.totalorder %s182, %s183
      %p194 = scmp.eq.s32.totalorder %s22, 0
      %p195 = por %p193, %p194
      %p196 = scmp.ne.s32.totalorder %s182, %s183
      %p197 = scmp.eq.s32.totalorder %s23, 1
      %p198 = por %p196, %p197
      %p200 = scmp.ne.s32.totalorder %s183, %s199
      %p201 = scmp.eq.s32.totalorder %s23, 0
      %p202 = por %p200, %p201
      %p203 = scmp.le.s32.totalorder 1, %s17
      %p204 = scmp.lt.s32.totalorder %s17, 3
      %p205 = pnand %p203, %p204
      %p206 = pneg %p205
      // Predicated region
      $region9: #{tpu_custom_call.1} parent=5 // pred_check
        _
      $region10: #{tpu_custom_call.1} parent=5 // pred_check_branch
        %208 = sbr.rel (%p205) target = $region12
      $region11: #{tpu_custom_call.1} parent=5 // pred_region
        %s209 = ssub.s32 %s17, 1
        // Predicated region
        $region13: #{tpu_custom_call.1} parent=11 // pred_check
          %p210 = pneg %p64
        $region14: #{tpu_custom_call.1} parent=11 // pred_check_branch
          %212 = sbr.rel (%p210) target = $region16
        $region15: #{tpu_custom_call.1} parent=11 // pred_region
          %s214 = ssub.s32 2048, 2048
          %215 = vsyncadd [#allocation5], %s214
          %s216 = sshll.u32 [#allocation4], 4
          %s217 = int_to_ptr.vmem [resolvable:$true] %s216
          %222 = dma.hbm_to_vmem [thread:$0]  %s1, 2048, %s217, [#allocation5], 64, 64, 4
        $region16: #{tpu_custom_call.1} parent=11 // pred_fallthru
          _
        // Predicated region
        $region17: #{tpu_custom_call.1} parent=11 // pred_check
          %p223 = pneg %p85
        $region18: #{tpu_custom_call.1} parent=11 // pred_check_branch
          %225 = sbr.rel (%p223) target = $region20
        $region19: #{tpu_custom_call.1} parent=11 // pred_region
          _
        $region20: #{tpu_custom_call.1} parent=11 // pred_fallthru
          _
        // Predicated region
        $region21: #{tpu_custom_call.1} parent=11 // pred_check
          %p226 = pneg %p106
        $region22: #{tpu_custom_call.1} parent=11 // pred_check_branch
          %228 = sbr.rel (%p226) target = $region24
        $region23: #{tpu_custom_call.1} parent=11 // pred_region
          _
        $region24: #{tpu_custom_call.1} parent=11 // pred_fallthru
          _
        // Predicated region
        $region25: #{tpu_custom_call.1} parent=11 // pred_check
          %p229 = pneg %p127
        $region26: #{tpu_custom_call.1} parent=11 // pred_check_branch
          %231 = sbr.rel (%p229) target = $region28
        $region27: #{tpu_custom_call.1} parent=11 // pred_region
          _
        $region28: #{tpu_custom_call.1} parent=11 // pred_fallthru
          _
        // Predicated region
        $region29: #{tpu_custom_call.1} parent=11 // pred_check
          %p232 = pneg %p148
        $region30: #{tpu_custom_call.1} parent=11 // pred_check_branch
          %234 = sbr.rel (%p232) target = $region32
        $region31: #{tpu_custom_call.1} parent=11 // pred_region
          _
        $region32: #{tpu_custom_call.1} parent=11 // pred_fallthru
          _
        // Predicated region
        $region33: #{tpu_custom_call.1} parent=11 // pred_check
          %p235 = pneg %p169
        $region34: #{tpu_custom_call.1} parent=11 // pred_check_branch
          %237 = sbr.rel (%p235) target = $region36
        $region35: #{tpu_custom_call.1} parent=11 // pred_region
          _
        $region36: #{tpu_custom_call.1} parent=11 // pred_fallthru
          _
      $region12: #{tpu_custom_call.1} parent=5 // pred_fallthru
        _
      %p238 = scmp.lt.s32.totalorder %s17, 2
      // Predicated region
      $region37: #{tpu_custom_call.1} parent=5 // pred_check
        %p239 = pneg %p238
      $region38: #{tpu_custom_call.1} parent=5 // pred_check_branch
        %241 = sbr.rel (%p239) target = $region40
      $region39: #{tpu_custom_call.1} parent=5 // pred_region
        // Predicated region
        $region41: #{tpu_custom_call.1} parent=39 // pred_check
          %p242 = pneg %p37
        $region42: #{tpu_custom_call.1} parent=39 // pred_check_branch
          %244 = sbr.rel (%p242) target = $region44
        $region43: #{tpu_custom_call.1} parent=39 // pred_region
          %s245 = sand.u32 %s27, 1
          %s246 = scalar_lea.sflag [#allocation3], %s245
          %s247 = sand.u32 %s27, 1
          %s248 = smul.addr %s247, 64
          %s249 = scalar_lea.vmem [#allocation2], %s248
          %s250 = smul.u32 4, %s17
          %s251 = ssub.s32 5, %s250
          %p252 = scmp.lt.s32.totalorder %s251, 4
          %s253 = scalar_select %p252, %s251, 4
          %s254 = smul.u32 128, %s253
          %s255 = smul.u32 %s254, 2
          %s257 = ssub.s32 1024, %s255
          %258 = vsyncadd %s246, %s257
          %p259 = scmp.ne.s32.totalorder 0, %s255
          %s260 = smul.addr %s250, 2
          %s261 = smul.addr %s260, 128
          %s262 = scalar_lea.hbm %s0, %s261
          %s263 = smul.u32 16, %s253
          %s264 = sshll.u32 %s249, 4
          %s265 = int_to_ptr.vmem [resolvable:$true] %s264
          %s266 = sshll.u32 %s263, 4
          %270 = dma.hbm_to_vmem [thread:$0]  (%p259), %s262, %s266, %s265, %s246, 256, 256, 16
        $region44: #{tpu_custom_call.1} parent=39 // pred_fallthru
          _
      $region40: #{tpu_custom_call.1} parent=5 // pred_fallthru
        _
      %p271 = scmp.le.s32.totalorder 1, %s17
      %p272 = scmp.lt.s32.totalorder %s17, 3
      %p273 = pnand %p271, %p272
      %p274 = pneg %p273
      // Predicated region
      $region45: #{tpu_custom_call.1} parent=5 // pred_check
        _
      $region46: #{tpu_custom_call.1} parent=5 // pred_check_branch
        %276 = sbr.rel (%p273) target = $region48
      $region47: #{tpu_custom_call.1} parent=5 // pred_region
        %s277 = ssub.s32 %s17, 1
        %s278 = sand.u32 %s30, 1
        %s279 = scalar_lea.sflag [#allocation3], %s278
        %s280 = sand.u32 %s30, 1
        %s281 = smul.addr %s280, 64
        %s282 = scalar_lea.vmem [#allocation2], %s281
        // Predicated region
        $region49: #{tpu_custom_call.1} parent=47 // pred_check
          %p283 = pneg %p43
        $region50: #{tpu_custom_call.1} parent=47 // pred_check_branch
          %285 = sbr.rel (%p283) target = $region52
        $region51: #{tpu_custom_call.1} parent=47 // pred_region
          %286 = dma.done %s279, 1024
        $region52: #{tpu_custom_call.1} parent=47 // pred_fallthru
          _
        // Predicated region
        $region53: #{tpu_custom_call.1} parent=47 // pred_check
          %p287 = pneg %p64
        $region54: #{tpu_custom_call.1} parent=47 // pred_check_branch
          %289 = sbr.rel (%p287) target = $region56
        $region55: #{tpu_custom_call.1} parent=47 // pred_region
          %290 = dma.done [#allocation5], 2048
        $region56: #{tpu_custom_call.1} parent=47 // pred_fallthru
          _
        %s291 = sand.u32 %s30, 1
        %s292 = scalar_lea.sflag [#allocation3], %s291
        %s293 = sand.u32 %s30, 1
        %s294 = smul.addr %s293, 64
        %s295 = scalar_lea.vmem [#allocation2], %s294
        %p296 = pneg %p43
        %p297 = pneg %p40
        %p298 = pneg %p64
        %p299 = pneg %p61
        %p300 = pneg %p85
        %p301 = pneg %p82
        %p302 = pneg %p106
        %p303 = pneg %p103
        %p304 = pneg %p127
        %p305 = pneg %p124
        %p306 = pneg %p148
        %p307 = pneg %p145
        %p308 = pneg %p169
        %p309 = pneg %p166
        %p310 = pneg %p195
        %p311 = pneg %p192
        %s312 = sand.u32 %s182, 1
        %s313 = sand.u32 %s182, 1
        %s314 = smul.addr %s313, 32
        %s315 = scalar_lea.vmem [#allocation6], %s314
        %s316 = smul.u32 4, %s22
        %s317 = ssub.s32 5, %s316
        %p318 = scmp.lt.s32.totalorder %s317, 4
        %s319 = scalar_select %p318, %s317, 4
        %s320 = smul.u32 128, %s319
        %s321 = smul.u32 %s320, 2
        %s322 = smul.u32 4, %s22
        %s323 = ssub.s32 5, %s322
        %p324 = scmp.lt.s32.totalorder %s323, 4
        %s325 = scalar_select %p324, %s323, 4
        %s326 = smul.u32 128, %s325
        %v328 = vld [vmem:[%s282] sm:$0xff]
        %v329 = vld [vmem:[%s282 + $0x8] sm:$0xff]
        %v330 = vld [vmem:[%s282 + $0x10] sm:$0xff]
        %v331 = vld [vmem:[%s282 + $0x18] sm:$0xff]
        %v332 = vld [vmem:[%s282 + $0x20] sm:$0xff]
        %v333 = vld [vmem:[%s282 + $0x28] sm:$0xff]
        %v334 = vld [vmem:[%s282 + $0x30] sm:$0xff]
        %v335 = vld [vmem:[%s282 + $0x38] sm:$0xff]
        %v336 = vpack.c.bf16 %v330, %v328
        %v337 = vpack.c.bf16 %v331, %v329
        %v338 = vpack.c.bf16 %v334, %v332
        %v339 = vpack.c.bf16 %v335, %v333
        %v340 = vld [vmem:[#allocation4] sm:$0xf]
        %v341 = vld [vmem:[#allocation4 + $0x4] sm:$0xf]
        %v342 = vld [vmem:[#allocation4 + $0x8] sm:$0xf]
        %v343 = vld [vmem:[#allocation4 + $0xc] sm:$0xf]
        %v344 = vld [vmem:[#allocation4 + $0x10] sm:$0xf]
        %v345 = vld [vmem:[#allocation4 + $0x14] sm:$0xf]
        %v346 = vld [vmem:[#allocation4 + $0x18] sm:$0xf]
        %v347 = vld [vmem:[#allocation4 + $0x1c] sm:$0xf]
        %v348 = vld [vmem:[#allocation4 + $0x20] sm:$0xf]
        %v349 = vld [vmem:[#allocation4 + $0x24] sm:$0xf]
        %v350 = vld [vmem:[#allocation4 + $0x28] sm:$0xf]
        %v351 = vld [vmem:[#allocation4 + $0x2c] sm:$0xf]
        %v352 = vld [vmem:[#allocation4 + $0x30] sm:$0xf]
        %v353 = vld [vmem:[#allocation4 + $0x34] sm:$0xf]
        %v354 = vld [vmem:[#allocation4 + $0x38] sm:$0xf]
        %v355 = vld [vmem:[#allocation4 + $0x3c] sm:$0xf]
        %v356 = vld [vmem:[#allocation4 + $0x40] sm:$0xf]
        %v357 = vld [vmem:[#allocation4 + $0x44] sm:$0xf]
        %v358 = vld [vmem:[#allocation4 + $0x48] sm:$0xf]
        %v359 = vld [vmem:[#allocation4 + $0x4c] sm:$0xf]
        %v360 = vld [vmem:[#allocation4 + $0x50] sm:$0xf]
        %v361 = vld [vmem:[#allocation4 + $0x54] sm:$0xf]
        %v362 = vld [vmem:[#allocation4 + $0x58] sm:$0xf]
        %v363 = vld [vmem:[#allocation4 + $0x5c] sm:$0xf]
        %v364 = vld [vmem:[#allocation4 + $0x60] sm:$0xf]
        %v365 = vld [vmem:[#allocation4 + $0x64] sm:$0xf]
        %v366 = vld [vmem:[#allocation4 + $0x68] sm:$0xf]
        %v367 = vld [vmem:[#allocation4 + $0x6c] sm:$0xf]
        %v368 = vld [vmem:[#allocation4 + $0x70] sm:$0xf]
        %v369 = vld [vmem:[#allocation4 + $0x74] sm:$0xf]
        %v370 = vld [vmem:[#allocation4 + $0x78] sm:$0xf]
        %v371 = vld [vmem:[#allocation4 + $0x7c] sm:$0xf]
        %v372 = vld [vmem:[%s2] sm:$0x1]
        %v374 = vlaneseq
        %v375 = vshrl.u32 %v374, 7
        %v376 = vsub.s32 0, %v375
        %v377 = vrot.slane %v372, %v376
        %v411 = vunpack.c.l.b16 %v340
        %v412 = vunpack.c.l.b16 %v341
        %v413 = vunpack.c.l.b16 %v342
        %v414 = vunpack.c.l.b16 %v343
        %v415 = vunpack.c.l.b16 %v344
        %v416 = vunpack.c.l.b16 %v345
        %v417 = vunpack.c.l.b16 %v346
        %v418 = vunpack.c.l.b16 %v347
        %v419 = vunpack.c.l.b16 %v348
        %v420 = vunpack.c.l.b16 %v349
        %v421 = vunpack.c.l.b16 %v350
        %v422 = vunpack.c.l.b16 %v351
        %v423 = vunpack.c.l.b16 %v352
        %v424 = vunpack.c.l.b16 %v353
        %v425 = vunpack.c.l.b16 %v354
        %v426 = vunpack.c.l.b16 %v355
        %v427 = vunpack.c.l.b16 %v356
        %v428 = vunpack.c.l.b16 %v357
        %v429 = vunpack.c.l.b16 %v358
        %v430 = vunpack.c.l.b16 %v359
        %v431 = vunpack.c.l.b16 %v360
        %v432 = vunpack.c.l.b16 %v361
        %v433 = vunpack.c.l.b16 %v362
        %v434 = vunpack.c.l.b16 %v363
        %v435 = vunpack.c.l.b16 %v364
        %v436 = vunpack.c.l.b16 %v365
        %v437 = vunpack.c.l.b16 %v366
        %v438 = vunpack.c.l.b16 %v367
        %v439 = vunpack.c.l.b16 %v368
        %v440 = vunpack.c.l.b16 %v369
        %v441 = vunpack.c.l.b16 %v370
        %v442 = vunpack.c.l.b16 %v371
        %v443 = vpack.c.b16 %v412, %v411
        %v444 = vpack.c.b16 %v414, %v413
        %v445 = vpack.c.b16 %v416, %v415
        %v446 = vpack.c.b16 %v418, %v417
        %v447 = vpack.c.b16 %v420, %v419
        %v448 = vpack.c.b16 %v422, %v421
        %v449 = vpack.c.b16 %v424, %v423
        %v450 = vpack.c.b16 %v426, %v425
        %v451 = vpack.c.b16 %v428, %v427
        %v452 = vpack.c.b16 %v430, %v429
        %v453 = vpack.c.b16 %v432, %v431
        %v454 = vpack.c.b16 %v434, %v433
        %v455 = vpack.c.b16 %v436, %v435
        %v456 = vpack.c.b16 %v438, %v437
        %v457 = vpack.c.b16 %v440, %v439
        %v458 = vpack.c.b16 %v442, %v441
        %475 = vmatprep.subr.bf16.mxu0 0
        %476 = vmatpush1.bf16.msra.mxu0 %v443
        %477 = vmatprep.subr.bf16.mxu0 0
        %478 = vmatpush1.bf16.msra.mxu0 %v444
        %479 = vmatprep.subr.bf16.mxu0 0
        %480 = vmatpush1.bf16.msra.mxu0 %v445
        %481 = vmatprep.subr.bf16.mxu0 0
        %482 = vmatpush1.bf16.msra.mxu0 %v446
        %483 = vmatprep.subr.bf16.mxu0 0
        %484 = vmatpush1.bf16.msra.mxu0 %v447
        %485 = vmatprep.subr.bf16.mxu0 0
        %486 = vmatpush1.bf16.msra.mxu0 %v448
        %487 = vmatprep.subr.bf16.mxu0 0
        %488 = vmatpush1.bf16.msra.mxu0 %v449
        %489 = vmatprep.subr.bf16.mxu0 0
        %490 = vmatpush1.bf16.msra.mxu0 %v450
        %491 = vmatprep.subr.bf16.mxu0 0
        %492 = vmatpush1.bf16.msra.mxu0 %v451
        %493 = vmatprep.subr.bf16.mxu0 0
        %494 = vmatpush1.bf16.msra.mxu0 %v452
        %495 = vmatprep.subr.bf16.mxu0 0
        %496 = vmatpush1.bf16.msra.mxu0 %v453
        %497 = vmatprep.subr.bf16.mxu0 0
        %498 = vmatpush1.bf16.msra.mxu0 %v454
        %499 = vmatprep.subr.bf16.mxu0 0
        %500 = vmatpush1.bf16.msra.mxu0 %v455
        %501 = vmatprep.subr.bf16.mxu0 0
        %502 = vmatpush1.bf16.msra.mxu0 %v456
        %503 = vmatprep.subr.bf16.mxu0 0
        %504 = vmatpush1.bf16.msra.mxu0 %v457
        %505 = vmatprep.subr.bf16.mxu0 0
        %506 = vmatpush1.bf16.msra.mxu0 %v458
        %507 = vmatprep.mubr.bf16.mxu0 %v337
        %508 = vmatmul.mubr.bf16.gmra.mrb[0].mxu0 %v336
        %v509 = vpop.f32.mrb[0].mxu0
        %v510 = vadd.f32 %v377, %v509
        %v511 = vpop.f32.mrb[0].mxu0
        %v512 = vpop.f32.mrb[0].mxu0
        %v513 = vadd.f32 %v377, %v512
        %v514 = vpop.f32.mrb[0].mxu0
        %515 = vmatprep.mubr.bf16.mxu0 %v339
        %516 = vmatmul.mubr.bf16.gmra.mrb[0].mxu0 %v338
        %v517 = vpop.f32.mrb[0].mxu0
        %v518 = vadd.f32 %v377, %v517
        %v519 = vpop.f32.mrb[0].mxu0
        %v520 = vpop.f32.mrb[0].mxu0
        %v521 = vadd.f32 %v377, %v520
        %v522 = vpop.f32.mrb[0].mxu0
        %523 = vdwg.mxu0
        %v524 = vmax.f32 %v510, 0.0
        %v525 = vmax.f32 %v513, 0.0
        %v526 = vmax.f32 %v518, 0.0
        %v527 = vmax.f32 %v521, 0.0
        %v528 = vpack.c.bf16 %v525, %v524
        %v529 = vpack.c.bf16 %v527, %v526
        %v530 = vld [vmem:[%s3] sm:$0xf]
        %v531 = vld [vmem:[%s3 + $0x4] sm:$0xf]
        %v532 = vld [vmem:[%s3 + $0x8] sm:$0xf]
        %v533 = vld [vmem:[%s3 + $0xc] sm:$0xf]
        %v534 = vld [vmem:[%s3 + $0x10] sm:$0xf]
        %v535 = vld [vmem:[%s3 + $0x14] sm:$0xf]
        %v536 = vld [vmem:[%s3 + $0x18] sm:$0xf]
        %v537 = vld [vmem:[%s3 + $0x1c] sm:$0xf]
        %v538 = vld [vmem:[%s3 + $0x20] sm:$0xf]
        %v539 = vld [vmem:[%s3 + $0x24] sm:$0xf]
        %v540 = vld [vmem:[%s3 + $0x28] sm:$0xf]
        %v541 = vld [vmem:[%s3 + $0x2c] sm:$0xf]
        %v542 = vld [vmem:[%s3 + $0x30] sm:$0xf]
        %v543 = vld [vmem:[%s3 + $0x34] sm:$0xf]
        %v544 = vld [vmem:[%s3 + $0x38] sm:$0xf]
        %v545 = vld [vmem:[%s3 + $0x3c] sm:$0xf]
        %v546 = vld [vmem:[%s4] sm:$0x1]
        %v548 = vlaneseq
        %v549 = vshrl.u32 %v548, 7
        %v550 = vsub.s32 0, %v549
        %v551 = vrot.slane %v546, %v550
        %v569 = vunpack.c.l.b16 %v530
        %v570 = vunpack.c.l.b16 %v531
        %v571 = vunpack.c.l.b16 %v532
        %v572 = vunpack.c.l.b16 %v533
        %v573 = vunpack.c.l.b16 %v534
        %v574 = vunpack.c.l.b16 %v535
        %v575 = vunpack.c.l.b16 %v536
        %v576 = vunpack.c.l.b16 %v537
        %v577 = vunpack.c.l.b16 %v538
        %v578 = vunpack.c.l.b16 %v539
        %v579 = vunpack.c.l.b16 %v540
        %v580 = vunpack.c.l.b16 %v541
        %v581 = vunpack.c.l.b16 %v542
        %v582 = vunpack.c.l.b16 %v543
        %v583 = vunpack.c.l.b16 %v544
        %v584 = vunpack.c.l.b16 %v545
        %v585 = vpack.c.b16 %v570, %v569
        %v586 = vpack.c.b16 %v572, %v571
        %v587 = vpack.c.b16 %v574, %v573
        %v588 = vpack.c.b16 %v576, %v575
        %v589 = vpack.c.b16 %v578, %v577
        %v590 = vpack.c.b16 %v580, %v579
        %v591 = vpack.c.b16 %v582, %v581
        %v592 = vpack.c.b16 %v584, %v583
        %601 = vmatprep.subr.bf16.mxu0 0
        %602 = vmatpush1.bf16.msra.mxu0 %v585
        %603 = vmatprep.subr.bf16.mxu0 0
        %604 = vmatpush1.bf16.msra.mxu0 %v586
        %605 = vmatprep.subr.bf16.mxu0 0
        %606 = vmatpush1.bf16.msra.mxu0 %v587
        %607 = vmatprep.subr.bf16.mxu0 0
        %608 = vmatpush1.bf16.msra.mxu0 %v588
        %609 = vmatprep.subr.bf16.mxu0 0
        %610 = vmatpush1.bf16.msra.mxu0 %v589
        %611 = vmatprep.subr.bf16.mxu0 0
        %612 = vmatpush1.bf16.msra.mxu0 %v590
        %613 = vmatprep.subr.bf16.mxu0 0
        %614 = vmatpush1.bf16.msra.mxu0 %v591
        %615 = vmatprep.subr.bf16.mxu0 0
        %616 = vmatpush1.bf16.msra.mxu0 %v592
        %617 = vmatprep.subr.bf16.mxu0 0
        %618 = vmatpush1.bf16.msra.mxu0 0
        %619 = vmatprep.subr.bf16.mxu0 0
        %620 = vmatpush1.bf16.msra.mxu0 0
        %621 = vmatprep.subr.bf16.mxu0 0
        %622 = vmatpush1.bf16.msra.mxu0 0
        %623 = vmatprep.subr.bf16.mxu0 0
        %624 = vmatpush1.bf16.msra.mxu0 0
        %625 = vmatprep.subr.bf16.mxu0 0
        %626 = vmatpush1.bf16.msra.mxu0 0
        %627 = vmatprep.subr.bf16.mxu0 0
        %628 = vmatpush1.bf16.msra.mxu0 0
        %629 = vmatprep.subr.bf16.mxu0 0
        %630 = vmatpush1.bf16.msra.mxu0 0
        %631 = vmatprep.subr.bf16.mxu0 0
        %632 = vmatpush1.bf16.msra.mxu0 0
        %633 = vmatprep.mubr.bf16.mxu0 0
        %634 = vmatmul.mubr.bf16.gmra.mrb[0].mxu0 %v528
        %v635 = vpop.f32.mrb[0].mxu0
        %v636 = vadd.f32 %v551, %v635
        %v637 = vpop.f32.mrb[0].mxu0
        %v638 = vpop.f32.mrb[0].mxu0
        %v639 = vadd.f32 %v551, %v638
        %v640 = vpop.f32.mrb[0].mxu0
        %641 = vmatprep.mubr.bf16.mxu0 0
        %642 = vmatmul.mubr.bf16.gmra.mrb[0].mxu0 %v529
        %v643 = vpop.f32.mrb[0].mxu0
        %v644 = vadd.f32 %v551, %v643
        %v645 = vpop.f32.mrb[0].mxu0
        %v646 = vpop.f32.mrb[0].mxu0
        %v647 = vadd.f32 %v551, %v646
        %v648 = vpop.f32.mrb[0].mxu0
        %649 = vdwg.mxu0
        %v650 = vmax.f32 %v636, 0.0
        %v651 = vmax.f32 %v639, 0.0
        %v652 = vmax.f32 %v644, 0.0
        %v653 = vmax.f32 %v647, 0.0
        %v654 = vpack.c.bf16 %v651, %v650
        %v655 = vpack.c.bf16 %v653, %v652
        %v656 = vld [vmem:[%s5] sm:$0xf]
        %v657 = vld [vmem:[%s5 + $0x4] sm:$0xf]
        %v658 = vld [vmem:[%s5 + $0x8] sm:$0xf]
        %v659 = vld [vmem:[%s5 + $0xc] sm:$0xf]
        %v660 = vld [vmem:[%s5 + $0x10] sm:$0xf]
        %v661 = vld [vmem:[%s5 + $0x14] sm:$0xf]
        %v662 = vld [vmem:[%s5 + $0x18] sm:$0xf]
        %v663 = vld [vmem:[%s5 + $0x1c] sm:$0xf]
        %v664 = vld [vmem:[%s5 + $0x20] sm:$0xf]
        %v665 = vld [vmem:[%s5 + $0x24] sm:$0xf]
        %v666 = vld [vmem:[%s5 + $0x28] sm:$0xf]
        %v667 = vld [vmem:[%s5 + $0x2c] sm:$0xf]
        %v668 = vld [vmem:[%s5 + $0x30] sm:$0xf]
        %v669 = vld [vmem:[%s5 + $0x34] sm:$0xf]
        %v670 = vld [vmem:[%s5 + $0x38] sm:$0xf]
        %v671 = vld [vmem:[%s5 + $0x3c] sm:$0xf]
        %v672 = vld [vmem:[%s6] sm:$0x1]
        %v674 = vlaneseq
        %v675 = vshrl.u32 %v674, 7
        %v676 = vsub.s32 0, %v675
        %v677 = vrot.slane %v672, %v676
        %v695 = vunpack.c.l.b16 %v656
        %v696 = vunpack.c.l.b16 %v657
        %v697 = vunpack.c.l.b16 %v658
        %v698 = vunpack.c.l.b16 %v659
        %v699 = vunpack.c.l.b16 %v660
        %v700 = vunpack.c.l.b16 %v661
        %v701 = vunpack.c.l.b16 %v662
        %v702 = vunpack.c.l.b16 %v663
        %v703 = vunpack.c.l.b16 %v664
        %v704 = vunpack.c.l.b16 %v665
        %v705 = vunpack.c.l.b16 %v666
        %v706 = vunpack.c.l.b16 %v667
        %v707 = vunpack.c.l.b16 %v668
        %v708 = vunpack.c.l.b16 %v669
        %v709 = vunpack.c.l.b16 %v670
        %v710 = vunpack.c.l.b16 %v671
        %v711 = vpack.c.b16 %v696, %v695
        %v712 = vpack.c.b16 %v698, %v697
        %v713 = vpack.c.b16 %v700, %v699
        %v714 = vpack.c.b16 %v702, %v701
        %v715 = vpack.c.b16 %v704, %v703
        %v716 = vpack.c.b16 %v706, %v705
        %v717 = vpack.c.b16 %v708, %v707
        %v718 = vpack.c.b16 %v710, %v709
        %727 = vmatprep.subr.bf16.mxu0 0
        %728 = vmatpush1.bf16.msra.mxu0 %v711
        %729 = vmatprep.subr.bf16.mxu0 0
        %730 = vmatpush1.bf16.msra.mxu0 %v712
        %731 = vmatprep.subr.bf16.mxu0 0
        %732 = vmatpush1.bf16.msra.mxu0 %v713
        %733 = vmatprep.subr.bf16.mxu0 0
        %734 = vmatpush1.bf16.msra.mxu0 %v714
        %735 = vmatprep.subr.bf16.mxu0 0
        %736 = vmatpush1.bf16.msra.mxu0 %v715
        %737 = vmatprep.subr.bf16.mxu0 0
        %738 = vmatpush1.bf16.msra.mxu0 %v716
        %739 = vmatprep.subr.bf16.mxu0 0
        %740 = vmatpush1.bf16.msra.mxu0 %v717
        %741 = vmatprep.subr.bf16.mxu0 0
        %742 = vmatpush1.bf16.msra.mxu0 %v718
        %743 = vmatprep.subr.bf16.mxu0 0
        %744 = vmatpush1.bf16.msra.mxu0 0
        %745 = vmatprep.subr.bf16.mxu0 0
        %746 = vmatpush1.bf16.msra.mxu0 0
        %747 = vmatprep.subr.bf16.mxu0 0
        %748 = vmatpush1.bf16.msra.mxu0 0
        %749 = vmatprep.subr.bf16.mxu0 0
        %750 = vmatpush1.bf16.msra.mxu0 0
        %751 = vmatprep.subr.bf16.mxu0 0
        %752 = vmatpush1.bf16.msra.mxu0 0
        %753 = vmatprep.subr.bf16.mxu0 0
        %754 = vmatpush1.bf16.msra.mxu0 0
        %755 = vmatprep.subr.bf16.mxu0 0
        %756 = vmatpush1.bf16.msra.mxu0 0
        %757 = vmatprep.subr.bf16.mxu0 0
        %758 = vmatpush1.bf16.msra.mxu0 0
        %759 = vmatprep.mubr.bf16.mxu0 0
        %760 = vmatmul.mubr.bf16.gmra.mrb[0].mxu0 %v654
        %v761 = vpop.f32.mrb[0].mxu0
        %v762 = vadd.f32 %v677, %v761
        %v763 = vpop.f32.mrb[0].mxu0
        %v764 = vpop.f32.mrb[0].mxu0
        %v765 = vadd.f32 %v677, %v764
        %v766 = vpop.f32.mrb[0].mxu0
        %767 = vmatprep.mubr.bf16.mxu0 0
        %768 = vmatmul.mubr.bf16.gmra.mrb[0].mxu0 %v655
        %v769 = vpop.f32.mrb[0].mxu0
        %v770 = vadd.f32 %v677, %v769
        %v771 = vpop.f32.mrb[0].mxu0
        %v772 = vpop.f32.mrb[0].mxu0
        %v773 = vadd.f32 %v677, %v772
        %v774 = vpop.f32.mrb[0].mxu0
        %775 = vdwg.mxu0
        %vm776 = vcmask 80896
        %v777 = vsel %vm776, %v762, -inf
        %778 = vmax.xlane.f32.xlu0 %v777
        %v779 = vpop.xlane.xlu0 %778
        %v780 = vsel %vm776, %v765, -inf
        %781 = vmax.xlane.f32.xlu0 %v780
        %v782 = vpop.xlane.xlu0 %781
        %v783 = vsel %vm776, %v770, -inf
        %784 = vmax.xlane.f32.xlu0 %v783
        %v785 = vpop.xlane.xlu0 %784
        %v786 = vsel %vm776, %v773, -inf
        %787 = vmax.xlane.f32.xlu0 %v786
        %v788 = vpop.xlane.xlu0 %787
        %v789 = vsub.f32 %v762, %v779
        %v790 = vsub.f32 %v765, %v782
        %v791 = vsub.f32 %v770, %v785
        %v792 = vsub.f32 %v773, %v788
        %v793 = vmul.f32 %v789, 1.442695
        %v794 = vpow.pop %v793
        %v795 = vmul.f32 %v790, 1.442695
        %v796 = vpow.pop %v795
        %v797 = vmul.f32 %v791, 1.442695
        %v798 = vpow.pop %v797
        %v799 = vmul.f32 %v792, 1.442695
        %v800 = vpow.pop %v799
        %v801 = vsel %vm776, %v794, 0.0
        %802 = vadd.xlane.f32.xlu0 %v801
        %v803 = vpop.xlane.xlu0 %802
        %v804 = vsel %vm776, %v796, 0.0
        %805 = vadd.xlane.f32.xlu0 %v804
        %v806 = vpop.xlane.xlu0 %805
        %v807 = vsel %vm776, %v798, 0.0
        %808 = vadd.xlane.f32.xlu0 %v807
        %v809 = vpop.xlane.xlu0 %808
        %v810 = vsel %vm776, %v800, 0.0
        %811 = vadd.xlane.f32.xlu0 %v810
        %v812 = vpop.xlane.xlu0 %811
        %v813 = vrcp.pop %v803
        %v814 = vmul.f32 %v794, %v813
        %v815 = vrcp.pop %v806
        %v816 = vmul.f32 %v796, %v815
        %v817 = vrcp.pop %v809
        %v818 = vmul.f32 %v798, %v817
        %v819 = vrcp.pop %v812
        %v820 = vmul.f32 %v800, %v819
        %821 = vst.msk [vmem:[%s315] sm:$0xff] %vm776, %v814
        %822 = vst.msk [vmem:[%s315 + $0x8] sm:$0xff] %vm776, %v816
        %823 = vst.msk [vmem:[%s315 + $0x10] sm:$0xff] %vm776, %v818
        %824 = vst.msk [vmem:[%s315 + $0x18] sm:$0xff] %vm776, %v820
        %s825 = sand.u32 %s182, 1
        %s826 = sand.u32 %s182, 1
        %s827 = smul.addr %s826, 32
        %s828 = scalar_lea.vmem [#allocation6], %s827
        // Predicated region
        $region57: #{tpu_custom_call.1} parent=47 // pred_check
          %p829 = pneg %p192
        $region58: #{tpu_custom_call.1} parent=47 // pred_check_branch
          %831 = sbr.rel (%p829) target = $region60
        $region59: #{tpu_custom_call.1} parent=47 // pred_region
          %s832 = smul.u32 4, %s22
          %s833 = ssub.s32 5, %s832
          %p834 = scmp.lt.s32.totalorder %s833, 4
          %s835 = scalar_select %p834, %s833, 4
          %s836 = smul.u32 128, %s835
          %p837 = scmp.ne.s32.totalorder 0, %s836
          %s838 = smul.addr %s832, 8
          %s839 = scalar_lea.vmem %s7, %s838
          // Predicated region
          $region61: #{tpu_custom_call.1} parent=59 // pred_check
            %p840 = pneg %p837
          $region62: #{tpu_custom_call.1} parent=59 // pred_check_branch
            %842 = sbr.rel (%p840) target = $region64
          $region63: #{tpu_custom_call.1} parent=59 // pred_region
            // Predicated region
            $region65: #{tpu_custom_call.1} parent=63 // pred_check
              _
            $region66: #{tpu_custom_call.1} parent=63 // pred_check_branch
              %844 = sbr.rel (0) target = $region68
            $region67: #{tpu_custom_call.1} parent=63 // pred_region
              // Predicated region
              $region87: #{tpu_custom_call.1} parent=67 // pred_check
                _
              $region88: #{tpu_custom_call.1} parent=67 // pred_check_branch
                %899 = sbr.rel (0) target = $region90
              $region89: #{tpu_custom_call.1} parent=67 // pred_region
                %s900 = sshrl.u32 %s835, 2
                // While loop
                $region91: #{tpu_custom_call.1} parent=89 // loop_pre_header
                  _
                $region92: #{tpu_custom_call.1} parent=89 // loop_header
                  %s902 = sphi 0, %s904
                  %p903 = scmp.ge.s32.totalorder %s902, %s900
                  %s907 = sphi 0, %s920
                  %s908 = sphi %s828, %s923
                  %s909 = sphi %s839, %s924
                $region93: #{tpu_custom_call.1} parent=89 // loop_header_branch
                  %906 = sbr.rel (%p903) target = $region97
                $region94: #{tpu_custom_call.1} parent=89 // loop_body
                  %v910 = vld [vmem:[%s908] sm:$0xff]
                  %911 = vst [vmem:[%s909] sm:$0xff] %v910
                  %v912 = vld [vmem:[%s908 + $0x8] sm:$0xff]
                  %913 = vst [vmem:[%s909 + $0x8] sm:$0xff] %v912
                  %v914 = vld [vmem:[%s908 + $0x10] sm:$0xff]
                  %915 = vst [vmem:[%s909 + $0x10] sm:$0xff] %v914
                  %v916 = vld [vmem:[%s908 + $0x18] sm:$0xff]
                  %917 = vst [vmem:[%s909 + $0x18] sm:$0xff] %v916
                  %s918 = sadd.s32 1, %s907
                  %p919 = scmp.ge.s32.totalorder %s918, %s900
                  %s920 = scalar_select %p919, 0, %s918
                  %s921 = smul.u32 %s920, 32
                  %s922 = smul.u32 %s920, 32
                  %s923 = scalar_lea.vmem %s828, %s921 [#allocation6]
                  %s924 = scalar_lea.vmem %s839, %s922
                $region95: #{tpu_custom_call.1} parent=89 // loop_footer
                  %s904 = sadd.s32 %s902, 1
                $region96: #{tpu_custom_call.1} parent=89 // loop_footer_branch
                  %901 = sbr.rel target = $region92
                $region97: #{tpu_custom_call.1} parent=89 // loop_exit
                  _
                %s925 = sshrl.u32 %s835, 2
                %s926 = sand.u32 %s835, 3
                %s927 = smul.u32 %s925, 4
                %s928 = smul.u32 8, %s927
                %s929 = scalar_lea.vmem %s828, %s928 [#allocation6]
                %s930 = smul.u32 8, %s927
                %s931 = scalar_lea.vmem %s839, %s930
                // While loop
                $region98: #{tpu_custom_call.1} parent=89 // loop_pre_header
                  _
                $region99: #{tpu_custom_call.1} parent=89 // loop_header
                  %s933 = sphi 0, %s935
                  %p934 = scmp.ge.s32.totalorder %s933, %s926
                  %s938 = sphi 0, %s945
                  %s939 = sphi %s929, %s948
                  %s940 = sphi %s931, %s949
                $region100: #{tpu_custom_call.1} parent=89 // loop_header_branch
                  %937 = sbr.rel (%p934) target = $region104
                $region101: #{tpu_custom_call.1} parent=89 // loop_body
                  %v941 = vld [vmem:[%s939] sm:$0xff]
                  %942 = vst [vmem:[%s940] sm:$0xff] %v941
                  %s943 = sadd.s32 1, %s938
                  %p944 = scmp.ge.s32.totalorder %s943, %s926
                  %s945 = scalar_select %p944, 0, %s943
                  %s946 = smul.u32 %s945, 8
                  %s947 = smul.u32 %s945, 8
                  %s948 = scalar_lea.vmem %s929, %s946 [#allocation6]
                  %s949 = scalar_lea.vmem %s931, %s947
                $region102: #{tpu_custom_call.1} parent=89 // loop_footer
                  %s935 = sadd.s32 %s933, 1
                $region103: #{tpu_custom_call.1} parent=89 // loop_footer_branch
                  %932 = sbr.rel target = $region99
                $region104: #{tpu_custom_call.1} parent=89 // loop_exit
                  _
              $region90: #{tpu_custom_call.1} parent=67 // pred_fallthru
                _
              // Predicated region
              $region105: #{tpu_custom_call.1} parent=67 // pred_check
                _
              $region106: #{tpu_custom_call.1} parent=67 // pred_check_branch
                %951 = sbr.rel target = $region108
              $region107: #{tpu_custom_call.1} parent=67 // pred_region
                _
              $region108: #{tpu_custom_call.1} parent=67 // pred_fallthru
                _
            $region68: #{tpu_custom_call.1} parent=63 // pred_fallthru
              _
            // Predicated region
            $region69: #{tpu_custom_call.1} parent=63 // pred_check
              _
            $region70: #{tpu_custom_call.1} parent=63 // pred_check_branch
              %846 = sbr.rel target = $region72
            $region71: #{tpu_custom_call.1} parent=63 // pred_region
              %s848 = sshrl.u32 %s835, 2
              // While loop
              $region73: #{tpu_custom_call.1} parent=71 // loop_pre_header
                _
              $region74: #{tpu_custom_call.1} parent=71 // loop_header
                %s850 = sphi 0, %s852
                %p851 = scmp.ge.s32.totalorder %s850, %s848
                %s855 = sphi 0, %s868
                %s856 = sphi %s828, %s871
                %s857 = sphi %s839, %s872
              $region75: #{tpu_custom_call.1} parent=71 // loop_header_branch
                %854 = sbr.rel (%p851) target = $region79
              $region76: #{tpu_custom_call.1} parent=71 // loop_body
                %v858 = vld [vmem:[%s856] sm:$0xff]
                %859 = vst [vmem:[%s857] sm:$0xff] %v858
                %v860 = vld [vmem:[%s856 + $0x8] sm:$0xff]
                %861 = vst [vmem:[%s857 + $0x8] sm:$0xff] %v860
                %v862 = vld [vmem:[%s856 + $0x10] sm:$0xff]
                %863 = vst [vmem:[%s857 + $0x10] sm:$0xff] %v862
                %v864 = vld [vmem:[%s856 + $0x18] sm:$0xff]
                %865 = vst [vmem:[%s857 + $0x18] sm:$0xff] %v864
                %s866 = sadd.s32 1, %s855
                %p867 = scmp.ge.s32.totalorder %s866, %s848
                %s868 = scalar_select %p867, 0, %s866
                %s869 = smul.u32 %s868, 32
                %s870 = smul.u32 %s868, 32
                %s871 = scalar_lea.vmem %s828, %s869 [#allocation6]
                %s872 = scalar_lea.vmem %s839, %s870
              $region77: #{tpu_custom_call.1} parent=71 // loop_footer
                %s852 = sadd.s32 %s850, 1
              $region78: #{tpu_custom_call.1} parent=71 // loop_footer_branch
                %849 = sbr.rel target = $region74
              $region79: #{tpu_custom_call.1} parent=71 // loop_exit
                _
              %s873 = sshrl.u32 %s835, 2
              %s874 = sand.u32 %s835, 3
              %s875 = smul.u32 %s873, 4
              %s876 = smul.u32 8, %s875
              %s877 = scalar_lea.vmem %s828, %s876 [#allocation6]
              %s878 = smul.u32 8, %s875
              %s879 = scalar_lea.vmem %s839, %s878
              // While loop
              $region80: #{tpu_custom_call.1} parent=71 // loop_pre_header
                _
              $region81: #{tpu_custom_call.1} parent=71 // loop_header
                %s881 = sphi 0, %s883
                %p882 = scmp.ge.s32.totalorder %s881, %s874
                %s886 = sphi 0, %s893
                %s887 = sphi %s877, %s896
                %s888 = sphi %s879, %s897
              $region82: #{tpu_custom_call.1} parent=71 // loop_header_branch
                %885 = sbr.rel (%p882) target = $region86
              $region83: #{tpu_custom_call.1} parent=71 // loop_body
                %v889 = vld [vmem:[%s887] sm:$0xff]
                %890 = vst [vmem:[%s888] sm:$0xff] %v889
                %s891 = sadd.s32 1, %s886
                %p892 = scmp.ge.s32.totalorder %s891, %s874
                %s893 = scalar_select %p892, 0, %s891
                %s894 = smul.u32 %s893, 8
                %s895 = smul.u32 %s893, 8
                %s896 = scalar_lea.vmem %s877, %s894 [#allocation6]
                %s897 = scalar_lea.vmem %s879, %s895
              $region84: #{tpu_custom_call.1} parent=71 // loop_footer
                %s883 = sadd.s32 %s881, 1
              $region85: #{tpu_custom_call.1} parent=71 // loop_footer_branch
                %880 = sbr.rel target = $region81
              $region86: #{tpu_custom_call.1} parent=71 // loop_exit
                _
            $region72: #{tpu_custom_call.1} parent=63 // pred_fallthru
              _
          $region64: #{tpu_custom_call.1} parent=59 // pred_fallthru
            _
          %952 = vnop
        $region60: #{tpu_custom_call.1} parent=47 // pred_fallthru
          _
      $region48: #{tpu_custom_call.1} parent=5 // pred_fallthru
        _
      %p953 = scmp.le.s32.totalorder 2, %s17
      // Predicated region
      $region109: #{tpu_custom_call.1} parent=5 // pred_check
        %p954 = pneg %p953
      $region110: #{tpu_custom_call.1} parent=5 // pred_check_branch
        %956 = sbr.rel (%p954) target = $region112
      $region111: #{tpu_custom_call.1} parent=5 // pred_region
        %s957 = ssub.s32 %s17, 2
        // Predicated region
        $region113: #{tpu_custom_call.1} parent=111 // pred_check
          %p958 = pneg %p198
        $region114: #{tpu_custom_call.1} parent=111 // pred_check_branch
          %960 = sbr.rel (%p958) target = $region116
        $region115: #{tpu_custom_call.1} parent=111 // pred_region
          %s961 = sand.u32 %s183, 1
          %s962 = sand.u32 %s183, 1
          %s963 = smul.addr %s962, 32
          %s964 = scalar_lea.vmem [#allocation6], %s963
        $region116: #{tpu_custom_call.1} parent=111 // pred_fallthru
          _
      $region112: #{tpu_custom_call.1} parent=5 // pred_fallthru
        _
    $region6: #{tpu_custom_call.1} parent=1 // loop_footer
      %s21 = sadd.s32 1, %s17
    $region7: #{tpu_custom_call.1} parent=1 // loop_footer_branch
      %16 = sbr.rel target = $region3
    $region8: #{tpu_custom_call.1} parent=1 // loop_exit
      _
    %965 = vsyncpa [#allocation3], 1
    %s966 = scalar_lea.sflag [#allocation3], 1
    %967 = vsyncpa %s966, 1
    %968 = vsyncpa [#allocation5], 1

</llo_original>
